<compile_context>
chip_gen: v6e
topology: v6e:2x2x1
jax: 0.10.0
libtpu: 0.0.40
codegen_flags: <defaults>
</compile_context>

<pallas_src>
import jax
import jax.numpy as jnp
from jax.experimental import pallas as pl
from jax.experimental.pallas import tpu as pltpu

NEG_SLOPE = 0.01   # F.leaky_relu default negative_slope
BN_EPS = 1e-5      # nn.BatchNorm1d default eps
LANE = 128         # TPU lane width


def _round_up(x, m):
    return ((x + m - 1) // m) * m


def mlp_kernel(x_ref,
               w1_ref, b1_ref,
               w2_ref, b2_ref,
               w3_ref, b3_ref,
               o_ref):
    """Fused forward pass for one batch tile.

    x_ref  : (TB, F)   bf16 input tile (BN1 already folded into w1/b1)
    wK_ref : (in, out) bf16 effective weight (weight-norm + BN folded, pre-transposed)
    bK_ref : (1, out)  f32 effective bias
    o_ref  : (TB, Tp)  f32 output tile (lane-dense, padded to 128)
    """
    # dense1 (BN1 folded) -> leaky_relu
    h = jnp.dot(x_ref[...], w1_ref[...], preferred_element_type=jnp.float32)
    h = h + b1_ref[...]
    h = jnp.maximum(h, NEG_SLOPE * h)

    # dense2 (BN2 folded, dropout = identity) -> leaky_relu
    h = jnp.dot(h.astype(jnp.bfloat16), w2_ref[...],
                preferred_element_type=jnp.float32)
    h = h + b2_ref[...]
    h = jnp.maximum(h, NEG_SLOPE * h)

    # dense3 (BN3 folded, dropout = identity)
    h = jnp.dot(h.astype(jnp.bfloat16), w3_ref[...],
                preferred_element_type=jnp.float32)
    h = h + b3_ref[...]

    o_ref[...] = h.astype(o_ref.dtype)


# ----------------------------------------------------------------------------- glue

def fold_batchnorm(gamma, beta, running_mean, running_var, eps=BN_EPS):
    """Return (scale, shift) so that BN(x) == x * scale + shift (eval mode)."""
    inv_std = 1.0 / jnp.sqrt(running_var + eps)
    scale = gamma * inv_std
    shift = beta - running_mean * scale
    return scale, shift


def weight_norm_effective(v, g):
    """PyTorch weight_norm default (dim=0): W[i,:] = g[i] * v[i,:] / ||v[i,:]||."""
    norm = jnp.sqrt(jnp.sum(v * v, axis=1, keepdims=True))
    return (g[:, None] / norm) * v


def fold_bn_into_linear(scale, shift, w_eff, bias):
    """(x*scale+shift) @ W.T + b  ==  x @ Wt + b'  with Wt=(W*scale).T, b'=W@shift+b."""
    w = (w_eff * scale[None, :]).T      # (in, out)
    b = w_eff @ shift + bias            # (out,)
    return w, b


def init_params(key, num_features, num_targets, hidden_size):
    ks = jax.random.split(key, 16)
    p = {}

    def linear_init(kw, kb, fan_in, fan_out):
        bound = 1.0 / jnp.sqrt(fan_in)
        v = jax.random.uniform(kw, (fan_out, fan_in), jnp.float32, -bound, bound)
        b = jax.random.uniform(kb, (fan_out,), jnp.float32, -bound, bound)
        g = jnp.sqrt(jnp.sum(v * v, axis=1))  # weight_norm init: g = ||v|| row-wise
        return v, g, b

    def bn_init(km, kv, dim):
        gamma = jnp.ones((dim,), jnp.float32)
        beta = jnp.zeros((dim,), jnp.float32)
        rmean = 0.1 * jax.random.normal(km, (dim,), jnp.float32)
        rvar = 1.0 + 0.1 * jax.random.uniform(kv, (dim,), jnp.float32)
        return gamma, beta, rmean, rvar

    p["bn1"] = bn_init(ks[0], ks[1], num_features)
    p["bn2"] = bn_init(ks[2], ks[3], hidden_size)
    p["bn3"] = bn_init(ks[4], ks[5], hidden_size)
    p["l1"] = linear_init(ks[6], ks[7], num_features, hidden_size)
    p["l2"] = linear_init(ks[8], ks[9], hidden_size, hidden_size)
    p["l3"] = linear_init(ks[10], ks[11], hidden_size, num_targets)
    return p


def model_forward(x, params, *, tb=256):
    B, F = x.shape
    H = params["l1"][0].shape[0]
    T = params["l3"][0].shape[0]

    # fold BN affine -> linear (dropout is identity in eval)
    s1, t1 = fold_batchnorm(*params["bn1"])
    s2, t2 = fold_batchnorm(*params["bn2"])
    s3, t3 = fold_batchnorm(*params["bn3"])

    w1e = weight_norm_effective(params["l1"][0], params["l1"][1])  # (H, F)
    w2e = weight_norm_effective(params["l2"][0], params["l2"][1])  # (H, H)
    w3e = weight_norm_effective(params["l3"][0], params["l3"][1])  # (T, H)

    w1, b1 = fold_bn_into_linear(s1, t1, w1e, params["l1"][2])     # (F, H), (H,)
    w2, b2 = fold_bn_into_linear(s2, t2, w2e, params["l2"][2])     # (H, H), (H,)
    w3, b3 = fold_bn_into_linear(s3, t3, w3e, params["l3"][2])     # (H, T), (T,)

    # lane-dense output: pad T up to a multiple of 128; slice outside the kernel
    Tp = _round_up(T, LANE)
    w3 = jnp.pad(w3, ((0, 0), (0, Tp - T)))
    b3 = jnp.pad(b3, (0, Tp - T))

    # batch tiling: TB multiple of 8, pad the batch to a multiple of TB
    TB = min(tb, _round_up(B, 8))
    Bp = _round_up(B, TB)
    xp = x if Bp == B else jnp.pad(x, ((0, Bp - B), (0, 0)))
    nb = Bp // TB

    # bf16 matmul operands, f32 accumulation / biases
    xp = xp.astype(jnp.bfloat16)
    w1 = w1.astype(jnp.bfloat16)
    w2 = w2.astype(jnp.bfloat16)
    w3 = w3.astype(jnp.bfloat16)
    b1 = b1.reshape(1, -1).astype(jnp.float32)
    b2 = b2.reshape(1, -1).astype(jnp.float32)
    b3 = b3.reshape(1, -1).astype(jnp.float32)

    # weights/biases stay VMEM-resident across batch tiles
    resident = lambda shape: pl.BlockSpec(shape, lambda i: (0, 0))

    flops = 2 * Bp * (F * H + H * H + H * Tp)
    bytes_accessed = (xp.size * 2
                      + (w1.size + w2.size + w3.size) * 2
                      + (b1.size + b2.size + b3.size) * 4
                      + Bp * Tp * 4)

    out = pl.pallas_call(
        mlp_kernel,
        out_shape=jax.ShapeDtypeStruct((Bp, Tp), jnp.float32),
        grid_spec=pltpu.PrefetchScalarGridSpec(
            num_scalar_prefetch=0,
            grid=(nb,),
            in_specs=[
                pl.BlockSpec((TB, F), lambda i: (i, 0)),   # x tile
                resident((F, H)), resident((1, H)),        # w1, b1
                resident((H, H)), resident((1, H)),        # w2, b2
                resident((H, Tp)), resident((1, Tp)),      # w3, b3
            ],
            out_specs=pl.BlockSpec((TB, Tp), lambda i: (i, 0)),
        ),
        compiler_params=pltpu.CompilerParams(
            dimension_semantics=("parallel",)),
        cost_estimate=pl.CostEstimate(
            flops=flops, transcendentals=0, bytes_accessed=bytes_accessed),
    )(xp, w1, b1, w2, b2, w3, b3)

    return out[:B, :T]


def model_forward_ref(x, params):
    """Pure-JAX f32 reference (eval-mode PyTorch semantics)."""
    s1, t1 = fold_batchnorm(*params["bn1"])
    s2, t2 = fold_batchnorm(*params["bn2"])
    s3, t3 = fold_batchnorm(*params["bn3"])
    w1 = weight_norm_effective(params["l1"][0], params["l1"][1])
    w2 = weight_norm_effective(params["l2"][0], params["l2"][1])
    w3 = weight_norm_effective(params["l3"][0], params["l3"][1])
    b1, b2, b3 = params["l1"][2], params["l2"][2], params["l3"][2]

    h = x * s1 + t1
    h = jax.nn.leaky_relu(h @ w1.T + b1, NEG_SLOPE)
    h = h * s2 + t2
    h = jax.nn.leaky_relu(h @ w2.T + b2, NEG_SLOPE)
    h = h * s3 + t3
    return h @ w3.T + b3


if __name__ == "__main__":
    num_features, num_targets, hidden_size = 32, 16, 64
    batch = 500  # not a multiple of the tile -> exercises batch padding

    key = jax.random.PRNGKey(0)
    kx, kp = jax.random.split(key)
    x = jax.random.normal(kx, (batch, num_features), jnp.float32)
    params = init_params(kp, num_features, num_targets, hidden_size)

    out = model_forward(x, params, tb=256)
    out = jax.block_until_ready(out)

    ref = model_forward_ref(x, params)
    assert out.shape == (batch, num_targets)
    # bf16 matmul operands with f32 accumulation -> ~1e-2 relative agreement
    assert jnp.allclose(out, ref, atol=5e-2, rtol=5e-2), "mismatch vs reference"
    print("KERNEL_OK")
</pallas_src>

<mosaic_0001>
module attributes {stable_mosaic.version = 11 : i64} {
  func.func @mlp_kernel(%arg0: i32, %arg1: memref<256x32xbf16, #tpu.memory_space<vmem>>, %arg2: memref<32x64xbf16, #tpu.memory_space<vmem>>, %arg3: memref<1x64xf32, #tpu.memory_space<vmem>>, %arg4: memref<64x64xbf16, #tpu.memory_space<vmem>>, %arg5: memref<1x64xf32, #tpu.memory_space<vmem>>, %arg6: memref<64x128xbf16, #tpu.memory_space<vmem>>, %arg7: memref<1x128xf32, #tpu.memory_space<vmem>>, %arg8: memref<256x128xf32, #tpu.memory_space<vmem>>) attributes {dimension_semantics = [#tpu.dimension_semantics<parallel>], iteration_bounds = array<i64: 2>, scalar_prefetch = 0 : i64, scratch_operands = 0 : i64, tpu.core_type = #tpu.core_type<tc>, window_params = [{transform_indices = @transform_0, window_bounds = array<i64: 256, 32>}, {pipeline_mode = #tpu.pipeline_mode<synchronous>, transform_indices = @transform_1, window_bounds = array<i64: 32, 64>}, {pipeline_mode = #tpu.pipeline_mode<synchronous>, transform_indices = @transform_2, window_bounds = array<i64: 1, 64>}, {pipeline_mode = #tpu.pipeline_mode<synchronous>, transform_indices = @transform_3, window_bounds = array<i64: 64, 64>}, {pipeline_mode = #tpu.pipeline_mode<synchronous>, transform_indices = @transform_4, window_bounds = array<i64: 1, 64>}, {pipeline_mode = #tpu.pipeline_mode<synchronous>, transform_indices = @transform_5, window_bounds = array<i64: 64, 128>}, {pipeline_mode = #tpu.pipeline_mode<synchronous>, transform_indices = @transform_6, window_bounds = array<i64: 1, 128>}, {transform_indices = @transform_7, window_bounds = array<i64: 256, 128>}]} {
    %c0 = arith.constant 0 : index
    %c0_0 = arith.constant 0 : index
    %0 = vector.load %arg1[%c0, %c0_0] : memref<256x32xbf16, #tpu.memory_space<vmem>>, vector<256x32xbf16>
    %c0_1 = arith.constant 0 : index
    %c0_2 = arith.constant 0 : index
    %1 = vector.load %arg2[%c0_1, %c0_2] : memref<32x64xbf16, #tpu.memory_space<vmem>>, vector<32x64xbf16>
    %cst = arith.constant dense<0.000000e+00> : vector<256x64xf32>
    %2 = tpu.matmul %0, %1, %cst {dimension_numbers = #tpu.dot_dimension_numbers<[1], [0], [0], [1], [0, 0, 1, 1], [], []>} : vector<256x32xbf16>, vector<32x64xbf16>, vector<256x64xf32> -> vector<256x64xf32>
    %c0_3 = arith.constant 0 : index
    %c0_4 = arith.constant 0 : index
    %3 = vector.load %arg3[%c0_3, %c0_4] : memref<1x64xf32, #tpu.memory_space<vmem>>, vector<1x64xf32>
    %4 = vector.broadcast %3 : vector<1x64xf32> to vector<256x64xf32>
    %5 = arith.addf %2, %4 : vector<256x64xf32>
    %cst_5 = arith.constant 0.00999999977 : f32
    %6 = vector.broadcast %cst_5 : f32 to vector<256x64xf32>
    %7 = arith.mulf %6, %5 : vector<256x64xf32>
    %8 = arith.maximumf %5, %7 : vector<256x64xf32>
    %9 = arith.truncf %8 : vector<256x64xf32> to vector<256x64xbf16>
    %c0_6 = arith.constant 0 : index
    %c0_7 = arith.constant 0 : index
    %10 = vector.load %arg4[%c0_6, %c0_7] : memref<64x64xbf16, #tpu.memory_space<vmem>>, vector<64x64xbf16>
    %cst_8 = arith.constant dense<0.000000e+00> : vector<256x64xf32>
    %11 = tpu.matmul %9, %10, %cst_8 {dimension_numbers = #tpu.dot_dimension_numbers<[1], [0], [0], [1], [0, 0, 1, 1], [], []>} : vector<256x64xbf16>, vector<64x64xbf16>, vector<256x64xf32> -> vector<256x64xf32>
    %c0_9 = arith.constant 0 : index
    %c0_10 = arith.constant 0 : index
    %12 = vector.load %arg5[%c0_9, %c0_10] : memref<1x64xf32, #tpu.memory_space<vmem>>, vector<1x64xf32>
    %13 = vector.broadcast %12 : vector<1x64xf32> to vector<256x64xf32>
    %14 = arith.addf %11, %13 : vector<256x64xf32>
    %cst_11 = arith.constant 0.00999999977 : f32
    %15 = vector.broadcast %cst_11 : f32 to vector<256x64xf32>
    %16 = arith.mulf %15, %14 : vector<256x64xf32>
    %17 = arith.maximumf %14, %16 : vector<256x64xf32>
    %18 = arith.truncf %17 : vector<256x64xf32> to vector<256x64xbf16>
    %c0_12 = arith.constant 0 : index
    %c0_13 = arith.constant 0 : index
    %19 = vector.load %arg6[%c0_12, %c0_13] : memref<64x128xbf16, #tpu.memory_space<vmem>>, vector<64x128xbf16>
    %cst_14 = arith.constant dense<0.000000e+00> : vector<256x128xf32>
    %20 = tpu.matmul %18, %19, %cst_14 {dimension_numbers = #tpu.dot_dimension_numbers<[1], [0], [0], [1], [0, 0, 1, 1], [], []>} : vector<256x64xbf16>, vector<64x128xbf16>, vector<256x128xf32> -> vector<256x128xf32>
    %c0_15 = arith.constant 0 : index
    %c0_16 = arith.constant 0 : index
    %21 = vector.load %arg7[%c0_15, %c0_16] : memref<1x128xf32, #tpu.memory_space<vmem>>, vector<1x128xf32>
    %22 = vector.broadcast %21 : vector<1x128xf32> to vector<256x128xf32>
    %23 = arith.addf %20, %22 : vector<256x128xf32>
    %c0_17 = arith.constant 0 : index
    %c0_18 = arith.constant 0 : index
    %24 = vector.load %arg8[%c0_17, %c0_18] : memref<256x128xf32, #tpu.memory_space<vmem>>, vector<256x128xf32>
    tpu.vector_store %arg8[%c0_17, %c0_18], %23 {strides = array<i32>} : memref<256x128xf32, #tpu.memory_space<vmem>>, vector<256x128xf32>,
    return
  }
  func.func @transform_0(%arg0: i32) -> (i32, i32) {
    %c0_i32 = arith.constant 0 : i32
    %c0_i32_0 = arith.constant 0 : i32
    return %arg0, %c0_i32 : i32, i32
  }
  func.func @transform_1(%arg0: i32) -> (i32, i32) {
    %c0_i32 = arith.constant 0 : i32
    %c0_i32_0 = arith.constant 0 : i32
    %c0_i32_1 = arith.constant 0 : i32
    return %c0_i32, %c0_i32_0 : i32, i32
  }
  func.func @transform_2(%arg0: i32) -> (i32, i32) {
    %c0_i32 = arith.constant 0 : i32
    %c0_i32_0 = arith.constant 0 : i32
    %c0_i32_1 = arith.constant 0 : i32
    return %c0_i32, %c0_i32_0 : i32, i32
  }
  func.func @transform_3(%arg0: i32) -> (i32, i32) {
    %c0_i32 = arith.constant 0 : i32
    %c0_i32_0 = arith.constant 0 : i32
    %c0_i32_1 = arith.constant 0 : i32
    return %c0_i32, %c0_i32_0 : i32, i32
  }
  func.func @transform_4(%arg0: i32) -> (i32, i32) {
    %c0_i32 = arith.constant 0 : i32
    %c0_i32_0 = arith.constant 0 : i32
    %c0_i32_1 = arith.constant 0 : i32
    return %c0_i32, %c0_i32_0 : i32, i32
  }
  func.func @transform_5(%arg0: i32) -> (i32, i32) {
    %c0_i32 = arith.constant 0 : i32
    %c0_i32_0 = arith.constant 0 : i32
    %c0_i32_1 = arith.constant 0 : i32
    return %c0_i32, %c0_i32_0 : i32, i32
  }
  func.func @transform_6(%arg0: i32) -> (i32, i32) {
    %c0_i32 = arith.constant 0 : i32
    %c0_i32_0 = arith.constant 0 : i32
    %c0_i32_1 = arith.constant 0 : i32
    return %c0_i32, %c0_i32_0 : i32, i32
  }
  func.func @transform_7(%arg0: i32) -> (i32, i32) {
    %c0_i32 = arith.constant 0 : i32
    %c0_i32_0 = arith.constant 0 : i32
    return %arg0, %c0_i32 : i32, i32
  }
}

</mosaic_0001>

<llo_original>
// kernel: tpu_custom_call.1
$region0: #{tpu_custom_call.1}
  #allocation0 [shape = 'u32[]', space=smem, size = 0x4, offset = 0x4, fixed_abs, tag = 'smem constant byte address 0x4 - core index']
  #allocation1 [shape = 'u32[144,128]{1,0:T(1,128)}', space=vmem, size = 0x12000, scoped, tag = 'internal scratch']
  %s0 = inlined_call_operand.vmem [shape: bf16[512,32], index: 0, kind: input, shape index: {}]
  %s1 = inlined_call_operand.vmem [shape: bf16[32,64], index: 1, kind: input, shape index: {}]
  %s2 = inlined_call_operand.vmem [shape: f32[1,64], index: 2, kind: input, shape index: {}]
  %s3 = inlined_call_operand.vmem [shape: bf16[64,64], index: 3, kind: input, shape index: {}]
  %s4 = inlined_call_operand.vmem [shape: f32[1,64], index: 4, kind: input, shape index: {}]
  %s5 = inlined_call_operand.vmem [shape: bf16[64,128], index: 5, kind: input, shape index: {}]
  %s6 = inlined_call_operand.vmem [shape: f32[1,128], index: 6, kind: input, shape index: {}]
  %s7 = inlined_call_operand.hbm [shape: f32[512,128], index: 7, kind: output, shape index: {}]
  %s8 = sld [smem:[#allocation0]]
  $region61: #{tpu_custom_call.1} parent=0
    _
  %s10 = ssub.s32 1, %s8
  %s11 = scalar_select 0, %s10, %s8
  $region1: #{tpu_custom_call.1} parent=0
    #allocation2 [shape = 'u8[262144]{0}', space=vmem, size = 0x40000, scoped, tag = 'output window, operand 0']
    #allocation3 [shape = 's32[2]{0}', space=sflag, size = 0x8, scoped, tag = 'scoped memory for tpu_custom_call.1']
    %12 = vsyncpa [#allocation3], 0
    %s13 = scalar_lea.sflag [#allocation3], 1
    %14 = vsyncpa %s13, 0
    loop: start=0, step=1, limit=4
    $region2: #{tpu_custom_call.1} parent=1 // loop_pre_header
      _
    $region3: #{tpu_custom_call.1} parent=1 // loop_header
      %s16 = sphi 0, %s20
      %p17 = scmp.ge.s32.totalorder %s16, 4
      %s26 = sphi 0, %s28
      %s29 = sphi 0, %s26
      %s30 = sphi 0, %s29
      %s46 = sphi 0, %s30
      %s50 = sphi 0, %s50
      %s52 = sphi 0, %s50
      %s53 = sphi 0, %s52
      %s67 = sphi 0, %s53
      %s71 = sphi 0, %s71
      %s73 = sphi 0, %s71
      %s74 = sphi 0, %s73
      %s88 = sphi 0, %s74
      %s92 = sphi 0, %s92
      %s94 = sphi 0, %s92
      %s95 = sphi 0, %s94
      %s109 = sphi 0, %s95
      %s113 = sphi 0, %s113
      %s115 = sphi 0, %s113
      %s116 = sphi 0, %s115
      %s130 = sphi 0, %s116
      %s134 = sphi 0, %s134
      %s136 = sphi 0, %s134
      %s137 = sphi 0, %s136
      %s151 = sphi 0, %s137
      %s155 = sphi 0, %s155
      %s157 = sphi 0, %s155
      %s158 = sphi 0, %s157
      %s172 = sphi 0, %s158
      %s178 = sphi 0, %s180
      %s181 = sphi 0, %s178
      %s182 = sphi 0, %s181
      %s198 = sphi 0, %s182
    $region4: #{tpu_custom_call.1} parent=1 // loop_header_branch
      %19 = sbr.rel (%p17) target = $region8
    $region5: #{tpu_custom_call.1} parent=1 // loop_body
      %s21 = ssub.s32 %s16, 1
      %s22 = ssub.s32 %s16, 2
      %s23 = sadd.s32 %s16, 1
      %s24 = ssub.s32 %s16, %s23
      %p25 = scmp.eq.s32.totalorder %s24, 0
      %s27 = sadd.s32 %s26, 1
      %s28 = scalar_select %p25, %s26, %s27
      %p31 = pneg %p25
      %p32 = scmp.eq.s32.totalorder %s16, 1
      %p33 = por %p31, %p32
      %p34 = scmp.ne.s32.totalorder %s26, %s29
      %p35 = scmp.eq.s32.totalorder %s16, 0
      %p36 = por %p34, %p35
      %p37 = scmp.ne.s32.totalorder %s26, %s29
      %p38 = scmp.eq.s32.totalorder %s21, 1
      %p39 = por %p37, %p38
      %p40 = scmp.ne.s32.totalorder %s29, %s30
      %p41 = scmp.eq.s32.totalorder %s21, 0
      %p42 = por %p40, %p41
      %p43 = scmp.ne.s32.totalorder %s29, %s30
      %p44 = scmp.eq.s32.totalorder %s22, 1
      %p45 = por %p43, %p44
      %p47 = scmp.ne.s32.totalorder %s30, %s46
      %p48 = scmp.eq.s32.totalorder %s22, 0
      %p49 = por %p47, %p48
      %s51 = sadd.s32 %s50, 1
      %p54 = scmp.eq.s32.totalorder %s16, 1
      %p55 = scmp.ne.s32.totalorder %s50, %s52
      %p56 = scmp.eq.s32.totalorder %s16, 0
      %p57 = por %p55, %p56
      %p58 = scmp.ne.s32.totalorder %s50, %s52
      %p59 = scmp.eq.s32.totalorder %s21, 1
      %p60 = por %p58, %p59
      %p61 = scmp.ne.s32.totalorder %s52, %s53
      %p62 = scmp.eq.s32.totalorder %s21, 0
      %p63 = por %p61, %p62
      %p64 = scmp.ne.s32.totalorder %s52, %s53
      %p65 = scmp.eq.s32.totalorder %s22, 1
      %p66 = por %p64, %p65
      %p68 = scmp.ne.s32.totalorder %s53, %s67
      %p69 = scmp.eq.s32.totalorder %s22, 0
      %p70 = por %p68, %p69
      %s72 = sadd.s32 %s71, 1
      %p75 = scmp.eq.s32.totalorder %s16, 1
      %p76 = scmp.ne.s32.totalorder %s71, %s73
      %p77 = scmp.eq.s32.totalorder %s16, 0
      %p78 = por %p76, %p77
      %p79 = scmp.ne.s32.totalorder %s71, %s73
      %p80 = scmp.eq.s32.totalorder %s21, 1
      %p81 = por %p79, %p80
      %p82 = scmp.ne.s32.totalorder %s73, %s74
      %p83 = scmp.eq.s32.totalorder %s21, 0
      %p84 = por %p82, %p83
      %p85 = scmp.ne.s32.totalorder %s73, %s74
      %p86 = scmp.eq.s32.totalorder %s22, 1
      %p87 = por %p85, %p86
      %p89 = scmp.ne.s32.totalorder %s74, %s88
      %p90 = scmp.eq.s32.totalorder %s22, 0
      %p91 = por %p89, %p90
      %s93 = sadd.s32 %s92, 1
      %p96 = scmp.eq.s32.totalorder %s16, 1
      %p97 = scmp.ne.s32.totalorder %s92, %s94
      %p98 = scmp.eq.s32.totalorder %s16, 0
      %p99 = por %p97, %p98
      %p100 = scmp.ne.s32.totalorder %s92, %s94
      %p101 = scmp.eq.s32.totalorder %s21, 1
      %p102 = por %p100, %p101
      %p103 = scmp.ne.s32.totalorder %s94, %s95
      %p104 = scmp.eq.s32.totalorder %s21, 0
      %p105 = por %p103, %p104
      %p106 = scmp.ne.s32.totalorder %s94, %s95
      %p107 = scmp.eq.s32.totalorder %s22, 1
      %p108 = por %p106, %p107
      %p110 = scmp.ne.s32.totalorder %s95, %s109
      %p111 = scmp.eq.s32.totalorder %s22, 0
      %p112 = por %p110, %p111
      %s114 = sadd.s32 %s113, 1
      %p117 = scmp.eq.s32.totalorder %s16, 1
      %p118 = scmp.ne.s32.totalorder %s113, %s115
      %p119 = scmp.eq.s32.totalorder %s16, 0
      %p120 = por %p118, %p119
      %p121 = scmp.ne.s32.totalorder %s113, %s115
      %p122 = scmp.eq.s32.totalorder %s21, 1
      %p123 = por %p121, %p122
      %p124 = scmp.ne.s32.totalorder %s115, %s116
      %p125 = scmp.eq.s32.totalorder %s21, 0
      %p126 = por %p124, %p125
      %p127 = scmp.ne.s32.totalorder %s115, %s116
      %p128 = scmp.eq.s32.totalorder %s22, 1
      %p129 = por %p127, %p128
      %p131 = scmp.ne.s32.totalorder %s116, %s130
      %p132 = scmp.eq.s32.totalorder %s22, 0
      %p133 = por %p131, %p132
      %s135 = sadd.s32 %s134, 1
      %p138 = scmp.eq.s32.totalorder %s16, 1
      %p139 = scmp.ne.s32.totalorder %s134, %s136
      %p140 = scmp.eq.s32.totalorder %s16, 0
      %p141 = por %p139, %p140
      %p142 = scmp.ne.s32.totalorder %s134, %s136
      %p143 = scmp.eq.s32.totalorder %s21, 1
      %p144 = por %p142, %p143
      %p145 = scmp.ne.s32.totalorder %s136, %s137
      %p146 = scmp.eq.s32.totalorder %s21, 0
      %p147 = por %p145, %p146
      %p148 = scmp.ne.s32.totalorder %s136, %s137
      %p149 = scmp.eq.s32.totalorder %s22, 1
      %p150 = por %p148, %p149
      %p152 = scmp.ne.s32.totalorder %s137, %s151
      %p153 = scmp.eq.s32.totalorder %s22, 0
      %p154 = por %p152, %p153
      %s156 = sadd.s32 %s155, 1
      %p159 = scmp.eq.s32.totalorder %s16, 1
      %p160 = scmp.ne.s32.totalorder %s155, %s157
      %p161 = scmp.eq.s32.totalorder %s16, 0
      %p162 = por %p160, %p161
      %p163 = scmp.ne.s32.totalorder %s155, %s157
      %p164 = scmp.eq.s32.totalorder %s21, 1
      %p165 = por %p163, %p164
      %p166 = scmp.ne.s32.totalorder %s157, %s158
      %p167 = scmp.eq.s32.totalorder %s21, 0
      %p168 = por %p166, %p167
      %p169 = scmp.ne.s32.totalorder %s157, %s158
      %p170 = scmp.eq.s32.totalorder %s22, 1
      %p171 = por %p169, %p170
      %p173 = scmp.ne.s32.totalorder %s158, %s172
      %p174 = scmp.eq.s32.totalorder %s22, 0
      %p175 = por %p173, %p174
      %s176 = ssub.s32 %s16, %s23
      %p177 = scmp.eq.s32.totalorder %s176, 0
      %s179 = sadd.s32 %s178, 1
      %s180 = scalar_select %p177, %s178, %s179
      %p183 = pneg %p177
      %p184 = scmp.eq.s32.totalorder %s16, 1
      %p185 = por %p183, %p184
      %p186 = scmp.ne.s32.totalorder %s178, %s181
      %p187 = scmp.eq.s32.totalorder %s16, 0
      %p188 = por %p186, %p187
      %p189 = scmp.ne.s32.totalorder %s178, %s181
      %p190 = scmp.eq.s32.totalorder %s21, 1
      %p191 = por %p189, %p190
      %p192 = scmp.ne.s32.totalorder %s181, %s182
      %p193 = scmp.eq.s32.totalorder %s21, 0
      %p194 = por %p192, %p193
      %p195 = scmp.ne.s32.totalorder %s181, %s182
      %p196 = scmp.eq.s32.totalorder %s22, 1
      %p197 = por %p195, %p196
      %p199 = scmp.ne.s32.totalorder %s182, %s198
      %p200 = scmp.eq.s32.totalorder %s22, 0
      %p201 = por %p199, %p200
      %p202 = scmp.le.s32.totalorder 1, %s16
      %p203 = scmp.lt.s32.totalorder %s16, 3
      %p204 = pnand %p202, %p203
      %p205 = pneg %p204
      // Predicated region
      $region9: #{tpu_custom_call.1} parent=5 // pred_check
        _
      $region10: #{tpu_custom_call.1} parent=5 // pred_check_branch
        %207 = sbr.rel (%p204) target = $region12
      $region11: #{tpu_custom_call.1} parent=5 // pred_region
        %s208 = ssub.s32 %s16, 1
        // Predicated region
        $region13: #{tpu_custom_call.1} parent=11 // pred_check
          %p209 = pneg %p63
        $region14: #{tpu_custom_call.1} parent=11 // pred_check_branch
          %211 = sbr.rel (%p209) target = $region16
        $region15: #{tpu_custom_call.1} parent=11 // pred_region
          _
        $region16: #{tpu_custom_call.1} parent=11 // pred_fallthru
          _
        // Predicated region
        $region17: #{tpu_custom_call.1} parent=11 // pred_check
          %p212 = pneg %p84
        $region18: #{tpu_custom_call.1} parent=11 // pred_check_branch
          %214 = sbr.rel (%p212) target = $region20
        $region19: #{tpu_custom_call.1} parent=11 // pred_region
          _
        $region20: #{tpu_custom_call.1} parent=11 // pred_fallthru
          _
        // Predicated region
        $region21: #{tpu_custom_call.1} parent=11 // pred_check
          %p215 = pneg %p105
        $region22: #{tpu_custom_call.1} parent=11 // pred_check_branch
          %217 = sbr.rel (%p215) target = $region24
        $region23: #{tpu_custom_call.1} parent=11 // pred_region
          _
        $region24: #{tpu_custom_call.1} parent=11 // pred_fallthru
          _
        // Predicated region
        $region25: #{tpu_custom_call.1} parent=11 // pred_check
          %p218 = pneg %p126
        $region26: #{tpu_custom_call.1} parent=11 // pred_check_branch
          %220 = sbr.rel (%p218) target = $region28
        $region27: #{tpu_custom_call.1} parent=11 // pred_region
          _
        $region28: #{tpu_custom_call.1} parent=11 // pred_fallthru
          _
        // Predicated region
        $region29: #{tpu_custom_call.1} parent=11 // pred_check
          %p221 = pneg %p147
        $region30: #{tpu_custom_call.1} parent=11 // pred_check_branch
          %223 = sbr.rel (%p221) target = $region32
        $region31: #{tpu_custom_call.1} parent=11 // pred_region
          _
        $region32: #{tpu_custom_call.1} parent=11 // pred_fallthru
          _
        // Predicated region
        $region33: #{tpu_custom_call.1} parent=11 // pred_check
          %p224 = pneg %p168
        $region34: #{tpu_custom_call.1} parent=11 // pred_check_branch
          %226 = sbr.rel (%p224) target = $region36
        $region35: #{tpu_custom_call.1} parent=11 // pred_region
          _
        $region36: #{tpu_custom_call.1} parent=11 // pred_fallthru
          _
      $region12: #{tpu_custom_call.1} parent=5 // pred_fallthru
        _
      %p227 = scmp.lt.s32.totalorder %s16, 2
      // Predicated region
      $region37: #{tpu_custom_call.1} parent=5 // pred_check
        %p228 = pneg %p227
      $region38: #{tpu_custom_call.1} parent=5 // pred_check_branch
        %230 = sbr.rel (%p228) target = $region40
      $region39: #{tpu_custom_call.1} parent=5 // pred_region
        // Predicated region
        $region41: #{tpu_custom_call.1} parent=39 // pred_check
          %p231 = pneg %p36
        $region42: #{tpu_custom_call.1} parent=39 // pred_check_branch
          %233 = sbr.rel (%p231) target = $region44
        $region43: #{tpu_custom_call.1} parent=39 // pred_region
          %s234 = smul.u32 32, %s16
          %p235 = scmp.lt.s32.totalorder %s234, 63
          %s236 = scalar_select %p235, %s234, 63
          %s237 = smul.addr %s236, 4
          %s238 = scalar_lea.vmem %s0, %s237
          %s239 = smul.u32 32, %s16
        $region44: #{tpu_custom_call.1} parent=39 // pred_fallthru
          _
      $region40: #{tpu_custom_call.1} parent=5 // pred_fallthru
        _
      %p240 = scmp.le.s32.totalorder 1, %s16
      %p241 = scmp.lt.s32.totalorder %s16, 3
      %p242 = pnand %p240, %p241
      %p243 = pneg %p242
      // Predicated region
      $region45: #{tpu_custom_call.1} parent=5 // pred_check
        _
      $region46: #{tpu_custom_call.1} parent=5 // pred_check_branch
        %245 = sbr.rel (%p242) target = $region48
      $region47: #{tpu_custom_call.1} parent=5 // pred_region
        %s246 = ssub.s32 %s16, 1
        %s247 = smul.u32 32, %s21
        %p248 = scmp.lt.s32.totalorder %s247, 63
        %s249 = scalar_select %p248, %s247, 63
        %s250 = smul.addr %s249, 4
        %s251 = scalar_lea.vmem %s0, %s250
        %p252 = pneg %p42
        %p253 = pneg %p39
        %p254 = pneg %p63
        %p255 = pneg %p60
        %p256 = pneg %p84
        %p257 = pneg %p81
        %p258 = pneg %p105
        %p259 = pneg %p102
        %p260 = pneg %p126
        %p261 = pneg %p123
        %p262 = pneg %p147
        %p263 = pneg %p144
        %p264 = pneg %p168
        %p265 = pneg %p165
        %p266 = pneg %p194
        %p267 = pneg %p191
        %s268 = sand.u32 %s181, 1
        %s269 = scalar_lea.sflag [#allocation3], %s268
        %s270 = sand.u32 %s181, 1
        %s271 = smul.addr %s270, 256
        %s272 = scalar_lea.vmem [#allocation2], %s271
        %s273 = smul.u32 32, %s21
        %p274 = scmp.lt.s32.totalorder %s273, 63
        %s275 = scalar_select %p274, %s273, 63
        %s276 = smul.addr %s275, 4
        %s277 = scalar_lea.vmem %s0, %s276
        %s278 = smul.u32 32, %s21
        %s279 = smul.u32 32, %s21
        %v281 = vld [vmem:[%s277] sm:$0xf]
        %v282 = vld [vmem:[%s277 + $0x4] sm:$0xf]
        %v283 = vld [vmem:[%s277 + $0x8] sm:$0xf]
        %v284 = vld [vmem:[%s277 + $0xc] sm:$0xf]
        %v285 = vld [vmem:[%s277 + $0x10] sm:$0xf]
        %v286 = vld [vmem:[%s277 + $0x14] sm:$0xf]
        %v287 = vld [vmem:[%s277 + $0x18] sm:$0xf]
        %v288 = vld [vmem:[%s277 + $0x1c] sm:$0xf]
        %v289 = vld [vmem:[%s277 + $0x20] sm:$0xf]
        %v290 = vld [vmem:[%s277 + $0x24] sm:$0xf]
        %v291 = vld [vmem:[%s277 + $0x28] sm:$0xf]
        %v292 = vld [vmem:[%s277 + $0x2c] sm:$0xf]
        %v293 = vld [vmem:[%s277 + $0x30] sm:$0xf]
        %v294 = vld [vmem:[%s277 + $0x34] sm:$0xf]
        %v295 = vld [vmem:[%s277 + $0x38] sm:$0xf]
        %v296 = vld [vmem:[%s277 + $0x3c] sm:$0xf]
        %v297 = vld [vmem:[%s277 + $0x40] sm:$0xf]
        %v298 = vld [vmem:[%s277 + $0x44] sm:$0xf]
        %v299 = vld [vmem:[%s277 + $0x48] sm:$0xf]
        %v300 = vld [vmem:[%s277 + $0x4c] sm:$0xf]
        %v301 = vld [vmem:[%s277 + $0x50] sm:$0xf]
        %v302 = vld [vmem:[%s277 + $0x54] sm:$0xf]
        %v303 = vld [vmem:[%s277 + $0x58] sm:$0xf]
        %v304 = vld [vmem:[%s277 + $0x5c] sm:$0xf]
        %v305 = vld [vmem:[%s277 + $0x60] sm:$0xf]
        %v306 = vld [vmem:[%s277 + $0x64] sm:$0xf]
        %v307 = vld [vmem:[%s277 + $0x68] sm:$0xf]
        %v308 = vld [vmem:[%s277 + $0x6c] sm:$0xf]
        %v309 = vld [vmem:[%s277 + $0x70] sm:$0xf]
        %v310 = vld [vmem:[%s277 + $0x74] sm:$0xf]
        %v311 = vld [vmem:[%s277 + $0x78] sm:$0xf]
        %v312 = vld [vmem:[%s277 + $0x7c] sm:$0xf]
        %v313 = vld [vmem:[%s1] sm:$0xf]
        %v314 = vld [vmem:[%s1 + $0x4] sm:$0xf]
        %v315 = vld [vmem:[%s1 + $0x8] sm:$0xf]
        %v316 = vld [vmem:[%s1 + $0xc] sm:$0xf]
        %v317 = vld [vmem:[%s2] sm:$0x1]
        %v319 = vlaneseq
        %v320 = vshrl.u32 %v319, 7
        %v321 = vsub.s32 0, %v320
        %v322 = vrot.slane %v317, %v321
        %v356 = vunpack.c.l.b16 %v281
        %v357 = vunpack.c.l.b16 %v282
        %v358 = vunpack.c.l.b16 %v283
        %v359 = vunpack.c.l.b16 %v284
        %v360 = vunpack.c.l.b16 %v285
        %v361 = vunpack.c.l.b16 %v286
        %v362 = vunpack.c.l.b16 %v287
        %v363 = vunpack.c.l.b16 %v288
        %v364 = vunpack.c.l.b16 %v289
        %v365 = vunpack.c.l.b16 %v290
        %v366 = vunpack.c.l.b16 %v291
        %v367 = vunpack.c.l.b16 %v292
        %v368 = vunpack.c.l.b16 %v293
        %v369 = vunpack.c.l.b16 %v294
        %v370 = vunpack.c.l.b16 %v295
        %v371 = vunpack.c.l.b16 %v296
        %v372 = vunpack.c.l.b16 %v297
        %v373 = vunpack.c.l.b16 %v298
        %v374 = vunpack.c.l.b16 %v299
        %v375 = vunpack.c.l.b16 %v300
        %v376 = vunpack.c.l.b16 %v301
        %v377 = vunpack.c.l.b16 %v302
        %v378 = vunpack.c.l.b16 %v303
        %v379 = vunpack.c.l.b16 %v304
        %v380 = vunpack.c.l.b16 %v305
        %v381 = vunpack.c.l.b16 %v306
        %v382 = vunpack.c.l.b16 %v307
        %v383 = vunpack.c.l.b16 %v308
        %v384 = vunpack.c.l.b16 %v309
        %v385 = vunpack.c.l.b16 %v310
        %v386 = vunpack.c.l.b16 %v311
        %v387 = vunpack.c.l.b16 %v312
        %v388 = vpack.c.b16 %v357, %v356
        %v389 = vpack.c.b16 %v359, %v358
        %v390 = vpack.c.b16 %v361, %v360
        %v391 = vpack.c.b16 %v363, %v362
        %v392 = vpack.c.b16 %v365, %v364
        %v393 = vpack.c.b16 %v367, %v366
        %v394 = vpack.c.b16 %v369, %v368
        %v395 = vpack.c.b16 %v371, %v370
        %v396 = vpack.c.b16 %v373, %v372
        %v397 = vpack.c.b16 %v375, %v374
        %v398 = vpack.c.b16 %v377, %v376
        %v399 = vpack.c.b16 %v379, %v378
        %v400 = vpack.c.b16 %v381, %v380
        %v401 = vpack.c.b16 %v383, %v382
        %v402 = vpack.c.b16 %v385, %v384
        %v403 = vpack.c.b16 %v387, %v386
        %v408 = vunpack.c.l.b16 %v313
        %v409 = vunpack.c.l.b16 %v314
        %v410 = vunpack.c.l.b16 %v315
        %v411 = vunpack.c.l.b16 %v316
        %v412 = vpack.c.b16 %v409, %v408
        %v413 = vpack.c.b16 %v411, %v410
        %vm416 = vcmask 261120
        %v418 = vsel %vm416, %v388, 0
        %v421 = vsel %vm416, %v389, 0
        %v424 = vsel %vm416, %v390, 0
        %v427 = vsel %vm416, %v391, 0
        %v430 = vsel %vm416, %v392, 0
        %v433 = vsel %vm416, %v393, 0
        %v436 = vsel %vm416, %v394, 0
        %v439 = vsel %vm416, %v395, 0
        %v442 = vsel %vm416, %v396, 0
        %v445 = vsel %vm416, %v397, 0
        %v448 = vsel %vm416, %v398, 0
        %v451 = vsel %vm416, %v399, 0
        %v454 = vsel %vm416, %v400, 0
        %v457 = vsel %vm416, %v401, 0
        %v460 = vsel %vm416, %v402, 0
        %v463 = vsel %vm416, %v403, 0
        %465 = vmatprep.subr.bf16.mxu0 0
        %466 = vmatpush1.bf16.msra.mxu0 0
        %467 = vmatprep.subr.bf16.mxu0 0
        %468 = vmatpush1.bf16.msra.mxu0 0
        %469 = vmatprep.subr.bf16.mxu0 0
        %470 = vmatpush1.bf16.msra.mxu0 0
        %471 = vmatprep.subr.bf16.mxu0 0
        %472 = vmatpush1.bf16.msra.mxu0 0
        %473 = vmatprep.subr.bf16.mxu0 0
        %474 = vmatpush1.bf16.msra.mxu0 0
        %475 = vmatprep.subr.bf16.mxu0 0
        %476 = vmatpush1.bf16.msra.mxu0 0
        %477 = vmatprep.subr.bf16.mxu0 0
        %478 = vmatpush1.bf16.msra.mxu0 %v413
        %479 = vmatprep.subr.bf16.mxu0 0
        %480 = vmatpush1.bf16.msra.mxu0 %v412
        %481 = vmatprep.subr.bf16.mxu0 0
        %482 = vmatpush2.bf16.msra.mxu0 0
        %483 = vmatprep.subr.bf16.mxu0 0
        %484 = vmatpush2.bf16.msra.mxu0 0
        %485 = vmatprep.subr.bf16.mxu0 0
        %486 = vmatpush2.bf16.msra.mxu0 0
        %487 = vmatprep.subr.bf16.mxu0 0
        %488 = vmatpush2.bf16.msra.mxu0 0
        %489 = vmatprep.subr.bf16.mxu0 0
        %490 = vmatpush2.bf16.msra.mxu0 0
        %491 = vmatprep.subr.bf16.mxu0 0
        %492 = vmatpush2.bf16.msra.mxu0 0
        %493 = vmatprep.subr.bf16.mxu0 0
        %494 = vmatpush2.bf16.msra.mxu0 0
        %495 = vmatprep.subr.bf16.mxu0 0
        %496 = vmatpush2.bf16.msra.mxu0 0
        %497 = vmatprep.mubr.bf16.mxu0 0
        %498 = vmatmul.mubr.bf16.gmra.mxu0 %v418
        %v499 = vpop.f32.mrf.mxu0
        %v500 = vadd.f32 %v322, %v499
        %v501 = vpop.f32.mrf.mxu0
        %v502 = vpop.f32.mrf.mxu0
        %v503 = vadd.f32 %v322, %v502
        %v504 = vpop.f32.mrf.mxu0
        %505 = vmatprep.mubr.bf16.mxu0 0
        %506 = vmatmul.mubr.bf16.gmra.mxu0 %v421
        %v507 = vpop.f32.mrf.mxu0
        %v508 = vadd.f32 %v322, %v507
        %v509 = vpop.f32.mrf.mxu0
        %v510 = vpop.f32.mrf.mxu0
        %v511 = vadd.f32 %v322, %v510
        %v512 = vpop.f32.mrf.mxu0
        %513 = vmatprep.mubr.bf16.mxu0 0
        %514 = vmatmul.mubr.bf16.gmra.mxu0 %v424
        %v515 = vpop.f32.mrf.mxu0
        %v516 = vadd.f32 %v322, %v515
        %v517 = vpop.f32.mrf.mxu0
        %v518 = vpop.f32.mrf.mxu0
        %v519 = vadd.f32 %v322, %v518
        %v520 = vpop.f32.mrf.mxu0
        %521 = vmatprep.mubr.bf16.mxu0 0
        %522 = vmatmul.mubr.bf16.gmra.mxu0 %v427
        %v523 = vpop.f32.mrf.mxu0
        %v524 = vadd.f32 %v322, %v523
        %v525 = vpop.f32.mrf.mxu0
        %v526 = vpop.f32.mrf.mxu0
        %v527 = vadd.f32 %v322, %v526
        %v528 = vpop.f32.mrf.mxu0
        %529 = vmatprep.mubr.bf16.mxu0 0
        %530 = vmatmul.mubr.bf16.gmra.mxu0 %v430
        %v531 = vpop.f32.mrf.mxu0
        %v532 = vadd.f32 %v322, %v531
        %v533 = vpop.f32.mrf.mxu0
        %v534 = vpop.f32.mrf.mxu0
        %v535 = vadd.f32 %v322, %v534
        %v536 = vpop.f32.mrf.mxu0
        %537 = vmatprep.mubr.bf16.mxu0 0
        %538 = vmatmul.mubr.bf16.gmra.mxu0 %v433
        %v539 = vpop.f32.mrf.mxu0
        %v540 = vadd.f32 %v322, %v539
        %v541 = vpop.f32.mrf.mxu0
        %v542 = vpop.f32.mrf.mxu0
        %v543 = vadd.f32 %v322, %v542
        %v544 = vpop.f32.mrf.mxu0
        %545 = vmatprep.mubr.bf16.mxu0 0
        %546 = vmatmul.mubr.bf16.gmra.mxu0 %v436
        %v547 = vpop.f32.mrf.mxu0
        %v548 = vadd.f32 %v322, %v547
        %v549 = vpop.f32.mrf.mxu0
        %v550 = vpop.f32.mrf.mxu0
        %v551 = vadd.f32 %v322, %v550
        %v552 = vpop.f32.mrf.mxu0
        %553 = vmatprep.mubr.bf16.mxu0 0
        %554 = vmatmul.mubr.bf16.gmra.mxu0 %v439
        %v555 = vpop.f32.mrf.mxu0
        %v556 = vadd.f32 %v322, %v555
        %v557 = vpop.f32.mrf.mxu0
        %v558 = vpop.f32.mrf.mxu0
        %v559 = vadd.f32 %v322, %v558
        %v560 = vpop.f32.mrf.mxu0
        %561 = vmatprep.mubr.bf16.mxu0 0
        %562 = vmatmul.mubr.bf16.gmra.mxu0 %v442
        %v563 = vpop.f32.mrf.mxu0
        %v564 = vadd.f32 %v322, %v563
        %v565 = vpop.f32.mrf.mxu0
        %v566 = vpop.f32.mrf.mxu0
        %v567 = vadd.f32 %v322, %v566
        %v568 = vpop.f32.mrf.mxu0
        %569 = vmatprep.mubr.bf16.mxu0 0
        %570 = vmatmul.mubr.bf16.gmra.mxu0 %v445
        %v571 = vpop.f32.mrf.mxu0
        %v572 = vadd.f32 %v322, %v571
        %v573 = vpop.f32.mrf.mxu0
        %v574 = vpop.f32.mrf.mxu0
        %v575 = vadd.f32 %v322, %v574
        %v576 = vpop.f32.mrf.mxu0
        %577 = vmatprep.mubr.bf16.mxu0 0
        %578 = vmatmul.mubr.bf16.gmra.mxu0 %v448
        %v579 = vpop.f32.mrf.mxu0
        %v580 = vadd.f32 %v322, %v579
        %v581 = vpop.f32.mrf.mxu0
        %v582 = vpop.f32.mrf.mxu0
        %v583 = vadd.f32 %v322, %v582
        %v584 = vpop.f32.mrf.mxu0
        %585 = vmatprep.mubr.bf16.mxu0 0
        %586 = vmatmul.mubr.bf16.gmra.mxu0 %v451
        %v587 = vpop.f32.mrf.mxu0
        %v588 = vadd.f32 %v322, %v587
        %v589 = vpop.f32.mrf.mxu0
        %v590 = vpop.f32.mrf.mxu0
        %v591 = vadd.f32 %v322, %v590
        %v592 = vpop.f32.mrf.mxu0
        %593 = vmatprep.mubr.bf16.mxu0 0
        %594 = vmatmul.mubr.bf16.gmra.mxu0 %v454
        %v595 = vpop.f32.mrf.mxu0
        %v596 = vadd.f32 %v322, %v595
        %v597 = vpop.f32.mrf.mxu0
        %v598 = vpop.f32.mrf.mxu0
        %v599 = vadd.f32 %v322, %v598
        %v600 = vpop.f32.mrf.mxu0
        %601 = vmatprep.mubr.bf16.mxu0 0
        %602 = vmatmul.mubr.bf16.gmra.mxu0 %v457
        %v603 = vpop.f32.mrf.mxu0
        %v604 = vadd.f32 %v322, %v603
        %v605 = vpop.f32.mrf.mxu0
        %v606 = vpop.f32.mrf.mxu0
        %v607 = vadd.f32 %v322, %v606
        %v608 = vpop.f32.mrf.mxu0
        %609 = vmatprep.mubr.bf16.mxu0 0
        %610 = vmatmul.mubr.bf16.gmra.mxu0 %v460
        %v611 = vpop.f32.mrf.mxu0
        %v612 = vadd.f32 %v322, %v611
        %v613 = vpop.f32.mrf.mxu0
        %v614 = vpop.f32.mrf.mxu0
        %v615 = vadd.f32 %v322, %v614
        %v616 = vpop.f32.mrf.mxu0
        %617 = vmatprep.mubr.bf16.mxu0 0
        %618 = vmatmul.mubr.bf16.gmra.mxu0 %v463
        %v619 = vpop.f32.mrf.mxu0
        %v620 = vadd.f32 %v322, %v619
        %v621 = vpop.f32.mrf.mxu0
        %v622 = vpop.f32.mrf.mxu0
        %v623 = vadd.f32 %v322, %v622
        %v624 = vpop.f32.mrf.mxu0
        %625 = vdwg.mxu0
        %v626 = vmul.f32 %v500, 0.01
        %v627 = vmul.f32 %v503, 0.01
        %v628 = vmul.f32 %v508, 0.01
        %v629 = vmul.f32 %v511, 0.01
        %v630 = vmul.f32 %v516, 0.01
        %v631 = vmul.f32 %v519, 0.01
        %v632 = vmul.f32 %v524, 0.01
        %v633 = vmul.f32 %v527, 0.01
        %v634 = vmul.f32 %v532, 0.01
        %v635 = vmul.f32 %v535, 0.01
        %v636 = vmul.f32 %v540, 0.01
        %v637 = vmul.f32 %v543, 0.01
        %v638 = vmul.f32 %v548, 0.01
        %v639 = vmul.f32 %v551, 0.01
        %v640 = vmul.f32 %v556, 0.01
        %v641 = vmul.f32 %v559, 0.01
        %v642 = vmul.f32 %v564, 0.01
        %v643 = vmul.f32 %v567, 0.01
        %v644 = vmul.f32 %v572, 0.01
        %v645 = vmul.f32 %v575, 0.01
        %v646 = vmul.f32 %v580, 0.01
        %v647 = vmul.f32 %v583, 0.01
        %v648 = vmul.f32 %v588, 0.01
        %v649 = vmul.f32 %v591, 0.01
        %v650 = vmul.f32 %v596, 0.01
        %v651 = vmul.f32 %v599, 0.01
        %v652 = vmul.f32 %v604, 0.01
        %v653 = vmul.f32 %v607, 0.01
        %v654 = vmul.f32 %v612, 0.01
        %v655 = vmul.f32 %v615, 0.01
        %v656 = vmul.f32 %v620, 0.01
        %v657 = vmul.f32 %v623, 0.01
        %v658 = vmax.f32 %v500, %v626
        %v659 = vmax.f32 %v503, %v627
        %v660 = vmax.f32 %v508, %v628
        %v661 = vmax.f32 %v511, %v629
        %v662 = vmax.f32 %v516, %v630
        %v663 = vmax.f32 %v519, %v631
        %v664 = vmax.f32 %v524, %v632
        %v665 = vmax.f32 %v527, %v633
        %v666 = vmax.f32 %v532, %v634
        %v667 = vmax.f32 %v535, %v635
        %v668 = vmax.f32 %v540, %v636
        %v669 = vmax.f32 %v543, %v637
        %v670 = vmax.f32 %v548, %v638
        %v671 = vmax.f32 %v551, %v639
        %v672 = vmax.f32 %v556, %v640
        %v673 = vmax.f32 %v559, %v641
        %v674 = vmax.f32 %v564, %v642
        %v675 = vmax.f32 %v567, %v643
        %v676 = vmax.f32 %v572, %v644
        %v677 = vmax.f32 %v575, %v645
        %v678 = vmax.f32 %v580, %v646
        %v679 = vmax.f32 %v583, %v647
        %v680 = vmax.f32 %v588, %v648
        %v681 = vmax.f32 %v591, %v649
        %v682 = vmax.f32 %v596, %v650
        %v683 = vmax.f32 %v599, %v651
        %v684 = vmax.f32 %v604, %v652
        %v685 = vmax.f32 %v607, %v653
        %v686 = vmax.f32 %v612, %v654
        %v687 = vmax.f32 %v615, %v655
        %v688 = vmax.f32 %v620, %v656
        %v689 = vmax.f32 %v623, %v657
        %v690 = vpack.c.bf16 %v659, %v658
        %v691 = vpack.c.bf16 %v661, %v660
        %v692 = vpack.c.bf16 %v663, %v662
        %v693 = vpack.c.bf16 %v665, %v664
        %v694 = vpack.c.bf16 %v667, %v666
        %v695 = vpack.c.bf16 %v669, %v668
        %v696 = vpack.c.bf16 %v671, %v670
        %v697 = vpack.c.bf16 %v673, %v672
        %v698 = vpack.c.bf16 %v675, %v674
        %v699 = vpack.c.bf16 %v677, %v676
        %v700 = vpack.c.bf16 %v679, %v678
        %v701 = vpack.c.bf16 %v681, %v680
        %v702 = vpack.c.bf16 %v683, %v682
        %v703 = vpack.c.bf16 %v685, %v684
        %v704 = vpack.c.bf16 %v687, %v686
        %v705 = vpack.c.bf16 %v689, %v688
        %v706 = vld [vmem:[%s3] sm:$0xf]
        %v707 = vld [vmem:[%s3 + $0x4] sm:$0xf]
        %v708 = vld [vmem:[%s3 + $0x8] sm:$0xf]
        %v709 = vld [vmem:[%s3 + $0xc] sm:$0xf]
        %v710 = vld [vmem:[%s3 + $0x10] sm:$0xf]
        %v711 = vld [vmem:[%s3 + $0x14] sm:$0xf]
        %v712 = vld [vmem:[%s3 + $0x18] sm:$0xf]
        %v713 = vld [vmem:[%s3 + $0x1c] sm:$0xf]
        %v714 = vld [vmem:[%s4] sm:$0x1]
        %v716 = vlaneseq
        %v717 = vshrl.u32 %v716, 7
        %v718 = vsub.s32 0, %v717
        %v719 = vrot.slane %v714, %v718
        %v729 = vunpack.c.l.b16 %v706
        %v730 = vunpack.c.l.b16 %v707
        %v731 = vunpack.c.l.b16 %v708
        %v732 = vunpack.c.l.b16 %v709
        %v733 = vunpack.c.l.b16 %v710
        %v734 = vunpack.c.l.b16 %v711
        %v735 = vunpack.c.l.b16 %v712
        %v736 = vunpack.c.l.b16 %v713
        %v737 = vpack.c.b16 %v730, %v729
        %v738 = vpack.c.b16 %v732, %v731
        %v739 = vpack.c.b16 %v734, %v733
        %v740 = vpack.c.b16 %v736, %v735
        %vm745 = vcmask 523264
        %v747 = vsel %vm745, %v690, 0
        %v750 = vsel %vm745, %v691, 0
        %v753 = vsel %vm745, %v692, 0
        %v756 = vsel %vm745, %v693, 0
        %v759 = vsel %vm745, %v694, 0
        %v762 = vsel %vm745, %v695, 0
        %v765 = vsel %vm745, %v696, 0
        %v768 = vsel %vm745, %v697, 0
        %v771 = vsel %vm745, %v698, 0
        %v774 = vsel %vm745, %v699, 0
        %v777 = vsel %vm745, %v700, 0
        %v780 = vsel %vm745, %v701, 0
        %v783 = vsel %vm745, %v702, 0
        %v786 = vsel %vm745, %v703, 0
        %v789 = vsel %vm745, %v704, 0
        %v792 = vsel %vm745, %v705, 0
        %794 = vmatprep.subr.bf16.mxu0 0
        %795 = vmatpush1.bf16.msra.mxu0 0
        %796 = vmatprep.subr.bf16.mxu0 0
        %797 = vmatpush1.bf16.msra.mxu0 0
        %798 = vmatprep.subr.bf16.mxu0 0
        %799 = vmatpush1.bf16.msra.mxu0 0
        %800 = vmatprep.subr.bf16.mxu0 0
        %801 = vmatpush1.bf16.msra.mxu0 0
        %802 = vmatprep.subr.bf16.mxu0 0
        %803 = vmatpush1.bf16.msra.mxu0 %v740
        %804 = vmatprep.subr.bf16.mxu0 0
        %805 = vmatpush1.bf16.msra.mxu0 %v739
        %806 = vmatprep.subr.bf16.mxu0 0
        %807 = vmatpush1.bf16.msra.mxu0 %v738
        %808 = vmatprep.subr.bf16.mxu0 0
        %809 = vmatpush1.bf16.msra.mxu0 %v737
        %810 = vmatprep.subr.bf16.mxu0 0
        %811 = vmatpush2.bf16.msra.mxu0 0
        %812 = vmatprep.subr.bf16.mxu0 0
        %813 = vmatpush2.bf16.msra.mxu0 0
        %814 = vmatprep.subr.bf16.mxu0 0
        %815 = vmatpush2.bf16.msra.mxu0 0
        %816 = vmatprep.subr.bf16.mxu0 0
        %817 = vmatpush2.bf16.msra.mxu0 0
        %818 = vmatprep.subr.bf16.mxu0 0
        %819 = vmatpush2.bf16.msra.mxu0 0
        %820 = vmatprep.subr.bf16.mxu0 0
        %821 = vmatpush2.bf16.msra.mxu0 0
        %822 = vmatprep.subr.bf16.mxu0 0
        %823 = vmatpush2.bf16.msra.mxu0 0
        %824 = vmatprep.subr.bf16.mxu0 0
        %825 = vmatpush2.bf16.msra.mxu0 0
        %826 = vmatprep.mubr.bf16.mxu0 0
        %827 = vmatmul.mubr.bf16.gmra.mxu0 %v747
        %v828 = vpop.f32.mrf.mxu0
        %v829 = vadd.f32 %v719, %v828
        %v830 = vpop.f32.mrf.mxu0
        %v831 = vpop.f32.mrf.mxu0
        %v832 = vadd.f32 %v719, %v831
        %v833 = vpop.f32.mrf.mxu0
        %834 = vmatprep.mubr.bf16.mxu0 0
        %835 = vmatmul.mubr.bf16.gmra.mxu0 %v750
        %v836 = vpop.f32.mrf.mxu0
        %v837 = vadd.f32 %v719, %v836
        %v838 = vpop.f32.mrf.mxu0
        %v839 = vpop.f32.mrf.mxu0
        %v840 = vadd.f32 %v719, %v839
        %v841 = vpop.f32.mrf.mxu0
        %842 = vmatprep.mubr.bf16.mxu0 0
        %843 = vmatmul.mubr.bf16.gmra.mxu0 %v753
        %v844 = vpop.f32.mrf.mxu0
        %v845 = vadd.f32 %v719, %v844
        %v846 = vpop.f32.mrf.mxu0
        %v847 = vpop.f32.mrf.mxu0
        %v848 = vadd.f32 %v719, %v847
        %v849 = vpop.f32.mrf.mxu0
        %850 = vmatprep.mubr.bf16.mxu0 0
        %851 = vmatmul.mubr.bf16.gmra.mxu0 %v756
        %v852 = vpop.f32.mrf.mxu0
        %v853 = vadd.f32 %v719, %v852
        %v854 = vpop.f32.mrf.mxu0
        %v855 = vpop.f32.mrf.mxu0
        %v856 = vadd.f32 %v719, %v855
        %v857 = vpop.f32.mrf.mxu0
        %858 = vmatprep.mubr.bf16.mxu0 0
        %859 = vmatmul.mubr.bf16.gmra.mxu0 %v759
        %v860 = vpop.f32.mrf.mxu0
        %v861 = vadd.f32 %v719, %v860
        %v862 = vpop.f32.mrf.mxu0
        %v863 = vpop.f32.mrf.mxu0
        %v864 = vadd.f32 %v719, %v863
        %v865 = vpop.f32.mrf.mxu0
        %866 = vmatprep.mubr.bf16.mxu0 0
        %867 = vmatmul.mubr.bf16.gmra.mxu0 %v762
        %v868 = vpop.f32.mrf.mxu0
        %v869 = vadd.f32 %v719, %v868
        %v870 = vpop.f32.mrf.mxu0
        %v871 = vpop.f32.mrf.mxu0
        %v872 = vadd.f32 %v719, %v871
        %v873 = vpop.f32.mrf.mxu0
        %874 = vmatprep.mubr.bf16.mxu0 0
        %875 = vmatmul.mubr.bf16.gmra.mxu0 %v765
        %v876 = vpop.f32.mrf.mxu0
        %v877 = vadd.f32 %v719, %v876
        %v878 = vpop.f32.mrf.mxu0
        %v879 = vpop.f32.mrf.mxu0
        %v880 = vadd.f32 %v719, %v879
        %v881 = vpop.f32.mrf.mxu0
        %882 = vmatprep.mubr.bf16.mxu0 0
        %883 = vmatmul.mubr.bf16.gmra.mxu0 %v768
        %v884 = vpop.f32.mrf.mxu0
        %v885 = vadd.f32 %v719, %v884
        %v886 = vpop.f32.mrf.mxu0
        %v887 = vpop.f32.mrf.mxu0
        %v888 = vadd.f32 %v719, %v887
        %v889 = vpop.f32.mrf.mxu0
        %890 = vmatprep.mubr.bf16.mxu0 0
        %891 = vmatmul.mubr.bf16.gmra.mxu0 %v771
        %v892 = vpop.f32.mrf.mxu0
        %v893 = vadd.f32 %v719, %v892
        %v894 = vpop.f32.mrf.mxu0
        %v895 = vpop.f32.mrf.mxu0
        %v896 = vadd.f32 %v719, %v895
        %v897 = vpop.f32.mrf.mxu0
        %898 = vmatprep.mubr.bf16.mxu0 0
        %899 = vmatmul.mubr.bf16.gmra.mxu0 %v774
        %v900 = vpop.f32.mrf.mxu0
        %v901 = vadd.f32 %v719, %v900
        %v902 = vpop.f32.mrf.mxu0
        %v903 = vpop.f32.mrf.mxu0
        %v904 = vadd.f32 %v719, %v903
        %v905 = vpop.f32.mrf.mxu0
        %906 = vmatprep.mubr.bf16.mxu0 0
        %907 = vmatmul.mubr.bf16.gmra.mxu0 %v777
        %v908 = vpop.f32.mrf.mxu0
        %v909 = vadd.f32 %v719, %v908
        %v910 = vpop.f32.mrf.mxu0
        %v911 = vpop.f32.mrf.mxu0
        %v912 = vadd.f32 %v719, %v911
        %v913 = vpop.f32.mrf.mxu0
        %914 = vmatprep.mubr.bf16.mxu0 0
        %915 = vmatmul.mubr.bf16.gmra.mxu0 %v780
        %v916 = vpop.f32.mrf.mxu0
        %v917 = vadd.f32 %v719, %v916
        %v918 = vpop.f32.mrf.mxu0
        %v919 = vpop.f32.mrf.mxu0
        %v920 = vadd.f32 %v719, %v919
        %v921 = vpop.f32.mrf.mxu0
        %922 = vmatprep.mubr.bf16.mxu0 0
        %923 = vmatmul.mubr.bf16.gmra.mxu0 %v783
        %v924 = vpop.f32.mrf.mxu0
        %v925 = vadd.f32 %v719, %v924
        %v926 = vpop.f32.mrf.mxu0
        %v927 = vpop.f32.mrf.mxu0
        %v928 = vadd.f32 %v719, %v927
        %v929 = vpop.f32.mrf.mxu0
        %930 = vmatprep.mubr.bf16.mxu0 0
        %931 = vmatmul.mubr.bf16.gmra.mxu0 %v786
        %v932 = vpop.f32.mrf.mxu0
        %v933 = vadd.f32 %v719, %v932
        %v934 = vpop.f32.mrf.mxu0
        %v935 = vpop.f32.mrf.mxu0
        %v936 = vadd.f32 %v719, %v935
        %v937 = vpop.f32.mrf.mxu0
        %938 = vmatprep.mubr.bf16.mxu0 0
        %939 = vmatmul.mubr.bf16.gmra.mxu0 %v789
        %v940 = vpop.f32.mrf.mxu0
        %v941 = vadd.f32 %v719, %v940
        %v942 = vpop.f32.mrf.mxu0
        %v943 = vpop.f32.mrf.mxu0
        %v944 = vadd.f32 %v719, %v943
        %v945 = vpop.f32.mrf.mxu0
        %946 = vmatprep.mubr.bf16.mxu0 0
        %947 = vmatmul.mubr.bf16.gmra.mxu0 %v792
        %v948 = vpop.f32.mrf.mxu0
        %v949 = vadd.f32 %v719, %v948
        %v950 = vpop.f32.mrf.mxu0
        %v951 = vpop.f32.mrf.mxu0
        %v952 = vadd.f32 %v719, %v951
        %v953 = vpop.f32.mrf.mxu0
        %954 = vdwg.mxu0
        %v955 = vmul.f32 %v829, 0.01
        %v956 = vmul.f32 %v832, 0.01
        %v957 = vmul.f32 %v837, 0.01
        %v958 = vmul.f32 %v840, 0.01
        %v959 = vmul.f32 %v845, 0.01
        %v960 = vmul.f32 %v848, 0.01
        %v961 = vmul.f32 %v853, 0.01
        %v962 = vmul.f32 %v856, 0.01
        %v963 = vmul.f32 %v861, 0.01
        %v964 = vmul.f32 %v864, 0.01
        %v965 = vmul.f32 %v869, 0.01
        %v966 = vmul.f32 %v872, 0.01
        %v967 = vmul.f32 %v877, 0.01
        %v968 = vmul.f32 %v880, 0.01
        %v969 = vmul.f32 %v885, 0.01
        %v970 = vmul.f32 %v888, 0.01
        %v971 = vmul.f32 %v893, 0.01
        %v972 = vmul.f32 %v896, 0.01
        %v973 = vmul.f32 %v901, 0.01
        %v974 = vmul.f32 %v904, 0.01
        %v975 = vmul.f32 %v909, 0.01
        %v976 = vmul.f32 %v912, 0.01
        %v977 = vmul.f32 %v917, 0.01
        %v978 = vmul.f32 %v920, 0.01
        %v979 = vmul.f32 %v925, 0.01
        %v980 = vmul.f32 %v928, 0.01
        %v981 = vmul.f32 %v933, 0.01
        %v982 = vmul.f32 %v936, 0.01
        %v983 = vmul.f32 %v941, 0.01
        %v984 = vmul.f32 %v944, 0.01
        %v985 = vmul.f32 %v949, 0.01
        %v986 = vmul.f32 %v952, 0.01
        %v987 = vmax.f32 %v829, %v955
        %v988 = vmax.f32 %v832, %v956
        %v989 = vmax.f32 %v837, %v957
        %v990 = vmax.f32 %v840, %v958
        %v991 = vmax.f32 %v845, %v959
        %v992 = vmax.f32 %v848, %v960
        %v993 = vmax.f32 %v853, %v961
        %v994 = vmax.f32 %v856, %v962
        %v995 = vmax.f32 %v861, %v963
        %v996 = vmax.f32 %v864, %v964
        %v997 = vmax.f32 %v869, %v965
        %v998 = vmax.f32 %v872, %v966
        %v999 = vmax.f32 %v877, %v967
        %v1000 = vmax.f32 %v880, %v968
        %v1001 = vmax.f32 %v885, %v969
        %v1002 = vmax.f32 %v888, %v970
        %v1003 = vmax.f32 %v893, %v971
        %v1004 = vmax.f32 %v896, %v972
        %v1005 = vmax.f32 %v901, %v973
        %v1006 = vmax.f32 %v904, %v974
        %v1007 = vmax.f32 %v909, %v975
        %v1008 = vmax.f32 %v912, %v976
        %v1009 = vmax.f32 %v917, %v977
        %v1010 = vmax.f32 %v920, %v978
        %v1011 = vmax.f32 %v925, %v979
        %v1012 = vmax.f32 %v928, %v980
        %v1013 = vmax.f32 %v933, %v981
        %v1014 = vmax.f32 %v936, %v982
        %v1015 = vmax.f32 %v941, %v983
        %v1016 = vmax.f32 %v944, %v984
        %v1017 = vmax.f32 %v949, %v985
        %v1018 = vmax.f32 %v952, %v986
        %v1019 = vpack.c.bf16 %v988, %v987
        %v1020 = vpack.c.bf16 %v990, %v989
        %v1021 = vpack.c.bf16 %v992, %v991
        %v1022 = vpack.c.bf16 %v994, %v993
        %v1023 = vpack.c.bf16 %v996, %v995
        %v1024 = vpack.c.bf16 %v998, %v997
        %v1025 = vpack.c.bf16 %v1000, %v999
        %v1026 = vpack.c.bf16 %v1002, %v1001
        %v1027 = vpack.c.bf16 %v1004, %v1003
        %v1028 = vpack.c.bf16 %v1006, %v1005
        %v1029 = vpack.c.bf16 %v1008, %v1007
        %v1030 = vpack.c.bf16 %v1010, %v1009
        %v1031 = vpack.c.bf16 %v1012, %v1011
        %v1032 = vpack.c.bf16 %v1014, %v1013
        %v1033 = vpack.c.bf16 %v1016, %v1015
        %v1034 = vpack.c.bf16 %v1018, %v1017
        %v1035 = vld [vmem:[%s5] sm:$0xf]
        %v1036 = vld [vmem:[%s5 + $0x4] sm:$0xf]
        %v1037 = vld [vmem:[%s5 + $0x8] sm:$0xf]
        %v1038 = vld [vmem:[%s5 + $0xc] sm:$0xf]
        %v1039 = vld [vmem:[%s5 + $0x10] sm:$0xf]
        %v1040 = vld [vmem:[%s5 + $0x14] sm:$0xf]
        %v1041 = vld [vmem:[%s5 + $0x18] sm:$0xf]
        %v1042 = vld [vmem:[%s5 + $0x1c] sm:$0xf]
        %v1043 = vld [vmem:[%s6] sm:$0x1]
        %v1045 = vlaneseq
        %v1046 = vshrl.u32 %v1045, 7
        %v1047 = vsub.s32 0, %v1046
        %v1048 = vrot.slane %v1043, %v1047
        %v1058 = vunpack.c.l.b16 %v1035
        %v1059 = vunpack.c.l.b16 %v1036
        %v1060 = vunpack.c.l.b16 %v1037
        %v1061 = vunpack.c.l.b16 %v1038
        %v1062 = vunpack.c.l.b16 %v1039
        %v1063 = vunpack.c.l.b16 %v1040
        %v1064 = vunpack.c.l.b16 %v1041
        %v1065 = vunpack.c.l.b16 %v1042
        %v1066 = vpack.c.b16 %v1059, %v1058
        %v1067 = vpack.c.b16 %v1061, %v1060
        %v1068 = vpack.c.b16 %v1063, %v1062
        %v1069 = vpack.c.b16 %v1065, %v1064
        %v1075 = vsel %vm745, %v1019, 0
        %v1078 = vsel %vm745, %v1020, 0
        %v1081 = vsel %vm745, %v1021, 0
        %v1084 = vsel %vm745, %v1022, 0
        %v1087 = vsel %vm745, %v1023, 0
        %v1090 = vsel %vm745, %v1024, 0
        %v1093 = vsel %vm745, %v1025, 0
        %v1096 = vsel %vm745, %v1026, 0
        %v1099 = vsel %vm745, %v1027, 0
        %v1102 = vsel %vm745, %v1028, 0
        %v1105 = vsel %vm745, %v1029, 0
        %v1108 = vsel %vm745, %v1030, 0
        %v1111 = vsel %vm745, %v1031, 0
        %v1114 = vsel %vm745, %v1032, 0
        %v1117 = vsel %vm745, %v1033, 0
        %v1120 = vsel %vm745, %v1034, 0
        %1122 = vmatprep.subr.bf16.mxu0 0
        %1123 = vmatpush1.bf16.msra.mxu0 0
        %1124 = vmatprep.subr.bf16.mxu0 0
        %1125 = vmatpush1.bf16.msra.mxu0 0
        %1126 = vmatprep.subr.bf16.mxu0 0
        %1127 = vmatpush1.bf16.msra.mxu0 0
        %1128 = vmatprep.subr.bf16.mxu0 0
        %1129 = vmatpush1.bf16.msra.mxu0 0
        %1130 = vmatprep.subr.bf16.mxu0 0
        %1131 = vmatpush1.bf16.msra.mxu0 %v1069
        %1132 = vmatprep.subr.bf16.mxu0 0
        %1133 = vmatpush1.bf16.msra.mxu0 %v1068
        %1134 = vmatprep.subr.bf16.mxu0 0
        %1135 = vmatpush1.bf16.msra.mxu0 %v1067
        %1136 = vmatprep.subr.bf16.mxu0 0
        %1137 = vmatpush1.bf16.msra.mxu0 %v1066
        %1138 = vmatprep.subr.bf16.mxu0 0
        %1139 = vmatpush2.bf16.msra.mxu0 0
        %1140 = vmatprep.subr.bf16.mxu0 0
        %1141 = vmatpush2.bf16.msra.mxu0 0
        %1142 = vmatprep.subr.bf16.mxu0 0
        %1143 = vmatpush2.bf16.msra.mxu0 0
        %1144 = vmatprep.subr.bf16.mxu0 0
        %1145 = vmatpush2.bf16.msra.mxu0 0
        %1146 = vmatprep.subr.bf16.mxu0 0
        %1147 = vmatpush2.bf16.msra.mxu0 0
        %1148 = vmatprep.subr.bf16.mxu0 0
        %1149 = vmatpush2.bf16.msra.mxu0 0
        %1150 = vmatprep.subr.bf16.mxu0 0
        %1151 = vmatpush2.bf16.msra.mxu0 0
        %1152 = vmatprep.subr.bf16.mxu0 0
        %1153 = vmatpush2.bf16.msra.mxu0 0
        %1154 = vmatprep.mubr.bf16.mxu0 0
        %1155 = vmatmul.mubr.bf16.gmra.mxu0 %v1075
        %v1156 = vpop.f32.mrf.mxu0
        %v1157 = vadd.f32 %v1048, %v1156
        %v1158 = vpop.f32.mrf.mxu0
        %v1159 = vpop.f32.mrf.mxu0
        %v1160 = vadd.f32 %v1048, %v1159
        %v1161 = vpop.f32.mrf.mxu0
        %1162 = vmatprep.mubr.bf16.mxu0 0
        %1163 = vmatmul.mubr.bf16.gmra.mxu0 %v1078
        %v1164 = vpop.f32.mrf.mxu0
        %v1165 = vadd.f32 %v1048, %v1164
        %v1166 = vpop.f32.mrf.mxu0
        %v1167 = vpop.f32.mrf.mxu0
        %v1168 = vadd.f32 %v1048, %v1167
        %v1169 = vpop.f32.mrf.mxu0
        %1170 = vmatprep.mubr.bf16.mxu0 0
        %1171 = vmatmul.mubr.bf16.gmra.mxu0 %v1081
        %v1172 = vpop.f32.mrf.mxu0
        %v1173 = vadd.f32 %v1048, %v1172
        %v1174 = vpop.f32.mrf.mxu0
        %v1175 = vpop.f32.mrf.mxu0
        %v1176 = vadd.f32 %v1048, %v1175
        %v1177 = vpop.f32.mrf.mxu0
        %1178 = vmatprep.mubr.bf16.mxu0 0
        %1179 = vmatmul.mubr.bf16.gmra.mxu0 %v1084
        %v1180 = vpop.f32.mrf.mxu0
        %v1181 = vadd.f32 %v1048, %v1180
        %v1182 = vpop.f32.mrf.mxu0
        %v1183 = vpop.f32.mrf.mxu0
        %v1184 = vadd.f32 %v1048, %v1183
        %v1185 = vpop.f32.mrf.mxu0
        %1186 = vmatprep.mubr.bf16.mxu0 0
        %1187 = vmatmul.mubr.bf16.gmra.mxu0 %v1087
        %v1188 = vpop.f32.mrf.mxu0
        %v1189 = vadd.f32 %v1048, %v1188
        %v1190 = vpop.f32.mrf.mxu0
        %v1191 = vpop.f32.mrf.mxu0
        %v1192 = vadd.f32 %v1048, %v1191
        %v1193 = vpop.f32.mrf.mxu0
        %1194 = vmatprep.mubr.bf16.mxu0 0
        %1195 = vmatmul.mubr.bf16.gmra.mxu0 %v1090
        %v1196 = vpop.f32.mrf.mxu0
        %v1197 = vadd.f32 %v1048, %v1196
        %v1198 = vpop.f32.mrf.mxu0
        %v1199 = vpop.f32.mrf.mxu0
        %v1200 = vadd.f32 %v1048, %v1199
        %v1201 = vpop.f32.mrf.mxu0
        %1202 = vmatprep.mubr.bf16.mxu0 0
        %1203 = vmatmul.mubr.bf16.gmra.mxu0 %v1093
        %v1204 = vpop.f32.mrf.mxu0
        %v1205 = vadd.f32 %v1048, %v1204
        %v1206 = vpop.f32.mrf.mxu0
        %v1207 = vpop.f32.mrf.mxu0
        %v1208 = vadd.f32 %v1048, %v1207
        %v1209 = vpop.f32.mrf.mxu0
        %1210 = vmatprep.mubr.bf16.mxu0 0
        %1211 = vmatmul.mubr.bf16.gmra.mxu0 %v1096
        %v1212 = vpop.f32.mrf.mxu0
        %v1213 = vadd.f32 %v1048, %v1212
        %v1214 = vpop.f32.mrf.mxu0
        %v1215 = vpop.f32.mrf.mxu0
        %v1216 = vadd.f32 %v1048, %v1215
        %v1217 = vpop.f32.mrf.mxu0
        %1218 = vmatprep.mubr.bf16.mxu0 0
        %1219 = vmatmul.mubr.bf16.gmra.mxu0 %v1099
        %v1220 = vpop.f32.mrf.mxu0
        %v1221 = vadd.f32 %v1048, %v1220
        %v1222 = vpop.f32.mrf.mxu0
        %v1223 = vpop.f32.mrf.mxu0
        %v1224 = vadd.f32 %v1048, %v1223
        %v1225 = vpop.f32.mrf.mxu0
        %1226 = vmatprep.mubr.bf16.mxu0 0
        %1227 = vmatmul.mubr.bf16.gmra.mxu0 %v1102
        %v1228 = vpop.f32.mrf.mxu0
        %v1229 = vadd.f32 %v1048, %v1228
        %v1230 = vpop.f32.mrf.mxu0
        %v1231 = vpop.f32.mrf.mxu0
        %v1232 = vadd.f32 %v1048, %v1231
        %v1233 = vpop.f32.mrf.mxu0
        %1234 = vmatprep.mubr.bf16.mxu0 0
        %1235 = vmatmul.mubr.bf16.gmra.mxu0 %v1105
        %v1236 = vpop.f32.mrf.mxu0
        %v1237 = vadd.f32 %v1048, %v1236
        %v1238 = vpop.f32.mrf.mxu0
        %v1239 = vpop.f32.mrf.mxu0
        %v1240 = vadd.f32 %v1048, %v1239
        %v1241 = vpop.f32.mrf.mxu0
        %1242 = vmatprep.mubr.bf16.mxu0 0
        %1243 = vmatmul.mubr.bf16.gmra.mxu0 %v1108
        %v1244 = vpop.f32.mrf.mxu0
        %v1245 = vadd.f32 %v1048, %v1244
        %v1246 = vpop.f32.mrf.mxu0
        %v1247 = vpop.f32.mrf.mxu0
        %v1248 = vadd.f32 %v1048, %v1247
        %v1249 = vpop.f32.mrf.mxu0
        %1250 = vmatprep.mubr.bf16.mxu0 0
        %1251 = vmatmul.mubr.bf16.gmra.mxu0 %v1111
        %v1252 = vpop.f32.mrf.mxu0
        %v1253 = vadd.f32 %v1048, %v1252
        %v1254 = vpop.f32.mrf.mxu0
        %v1255 = vpop.f32.mrf.mxu0
        %v1256 = vadd.f32 %v1048, %v1255
        %v1257 = vpop.f32.mrf.mxu0
        %1258 = vmatprep.mubr.bf16.mxu0 0
        %1259 = vmatmul.mubr.bf16.gmra.mxu0 %v1114
        %v1260 = vpop.f32.mrf.mxu0
        %v1261 = vadd.f32 %v1048, %v1260
        %v1262 = vpop.f32.mrf.mxu0
        %v1263 = vpop.f32.mrf.mxu0
        %v1264 = vadd.f32 %v1048, %v1263
        %v1265 = vpop.f32.mrf.mxu0
        %1266 = vmatprep.mubr.bf16.mxu0 0
        %1267 = vmatmul.mubr.bf16.gmra.mxu0 %v1117
        %v1268 = vpop.f32.mrf.mxu0
        %v1269 = vadd.f32 %v1048, %v1268
        %v1270 = vpop.f32.mrf.mxu0
        %v1271 = vpop.f32.mrf.mxu0
        %v1272 = vadd.f32 %v1048, %v1271
        %v1273 = vpop.f32.mrf.mxu0
        %1274 = vmatprep.mubr.bf16.mxu0 0
        %1275 = vmatmul.mubr.bf16.gmra.mxu0 %v1120
        %v1276 = vpop.f32.mrf.mxu0
        %v1277 = vadd.f32 %v1048, %v1276
        %v1278 = vpop.f32.mrf.mxu0
        %v1279 = vpop.f32.mrf.mxu0
        %v1280 = vadd.f32 %v1048, %v1279
        %v1281 = vpop.f32.mrf.mxu0
        %1282 = vdwg.mxu0
        %1283 = vst [vmem:[%s272] sm:$0xff] %v1157
        %1284 = vst [vmem:[%s272 + $0x8] sm:$0xff] %v1160
        %1285 = vst [vmem:[%s272 + $0x10] sm:$0xff] %v1165
        %1286 = vst [vmem:[%s272 + $0x18] sm:$0xff] %v1168
        %1287 = vst [vmem:[%s272 + $0x20] sm:$0xff] %v1173
        %1288 = vst [vmem:[%s272 + $0x28] sm:$0xff] %v1176
        %1289 = vst [vmem:[%s272 + $0x30] sm:$0xff] %v1181
        %1290 = vst [vmem:[%s272 + $0x38] sm:$0xff] %v1184
        %1291 = vst [vmem:[%s272 + $0x40] sm:$0xff] %v1189
        %1292 = vst [vmem:[%s272 + $0x48] sm:$0xff] %v1192
        %1293 = vst [vmem:[%s272 + $0x50] sm:$0xff] %v1197
        %1294 = vst [vmem:[%s272 + $0x58] sm:$0xff] %v1200
        %1295 = vst [vmem:[%s272 + $0x60] sm:$0xff] %v1205
        %1296 = vst [vmem:[%s272 + $0x68] sm:$0xff] %v1208
        %1297 = vst [vmem:[%s272 + $0x70] sm:$0xff] %v1213
        %1298 = vst [vmem:[%s272 + $0x78] sm:$0xff] %v1216
        %1299 = vst [vmem:[%s272 + $0x80] sm:$0xff] %v1221
        %1300 = vst [vmem:[%s272 + $0x88] sm:$0xff] %v1224
        %1301 = vst [vmem:[%s272 + $0x90] sm:$0xff] %v1229
        %1302 = vst [vmem:[%s272 + $0x98] sm:$0xff] %v1232
        %1303 = vst [vmem:[%s272 + $0xa0] sm:$0xff] %v1237
        %1304 = vst [vmem:[%s272 + $0xa8] sm:$0xff] %v1240
        %1305 = vst [vmem:[%s272 + $0xb0] sm:$0xff] %v1245
        %1306 = vst [vmem:[%s272 + $0xb8] sm:$0xff] %v1248
        %1307 = vst [vmem:[%s272 + $0xc0] sm:$0xff] %v1253
        %1308 = vst [vmem:[%s272 + $0xc8] sm:$0xff] %v1256
        %1309 = vst [vmem:[%s272 + $0xd0] sm:$0xff] %v1261
        %1310 = vst [vmem:[%s272 + $0xd8] sm:$0xff] %v1264
        %1311 = vst [vmem:[%s272 + $0xe0] sm:$0xff] %v1269
        %1312 = vst [vmem:[%s272 + $0xe8] sm:$0xff] %v1272
        %1313 = vst [vmem:[%s272 + $0xf0] sm:$0xff] %v1277
        %1314 = vst [vmem:[%s272 + $0xf8] sm:$0xff] %v1280
        %s1315 = sand.u32 %s181, 1
        %s1316 = scalar_lea.sflag [#allocation3], %s1315
        %s1317 = sand.u32 %s181, 1
        %s1318 = smul.addr %s1317, 256
        %s1319 = scalar_lea.vmem [#allocation2], %s1318
        // Predicated region
        $region49: #{tpu_custom_call.1} parent=47 // pred_check
          %p1320 = pneg %p191
        $region50: #{tpu_custom_call.1} parent=47 // pred_check_branch
          %1322 = sbr.rel (%p1320) target = $region52
        $region51: #{tpu_custom_call.1} parent=47 // pred_region
          %s1323 = smul.u32 32, %s21
          %s1325 = ssub.s32 4096, 4096
          %1326 = vsyncadd %s1316, %s1325
          %s1327 = smul.addr %s1323, 128
          %s1328 = scalar_lea.hbm %s7, %s1327
          %s1329 = sshll.u32 %s1319, 4
          %s1330 = int_to_ptr.vmem [resolvable:$true] %s1329
          %1335 = dma.vmem_to_hbm [thread:$0]  %s1330, 4096, %s1328, %s1316, 128, 128, 8
        $region52: #{tpu_custom_call.1} parent=47 // pred_fallthru
          _
      $region48: #{tpu_custom_call.1} parent=5 // pred_fallthru
        _
      %p1336 = scmp.le.s32.totalorder 2, %s16
      // Predicated region
      $region53: #{tpu_custom_call.1} parent=5 // pred_check
        %p1337 = pneg %p1336
      $region54: #{tpu_custom_call.1} parent=5 // pred_check_branch
        %1339 = sbr.rel (%p1337) target = $region56
      $region55: #{tpu_custom_call.1} parent=5 // pred_region
        %s1340 = ssub.s32 %s16, 2
        // Predicated region
        $region57: #{tpu_custom_call.1} parent=55 // pred_check
          %p1341 = pneg %p197
        $region58: #{tpu_custom_call.1} parent=55 // pred_check_branch
          %1343 = sbr.rel (%p1341) target = $region60
        $region59: #{tpu_custom_call.1} parent=55 // pred_region
          %s1344 = sand.u32 %s182, 1
          %s1345 = scalar_lea.sflag [#allocation3], %s1344
          %s1346 = sand.u32 %s182, 1
          %s1347 = smul.addr %s1346, 256
          %s1348 = scalar_lea.vmem [#allocation2], %s1347
          %1349 = dma.done %s1345, 4096
        $region60: #{tpu_custom_call.1} parent=55 // pred_fallthru
          _
      $region56: #{tpu_custom_call.1} parent=5 // pred_fallthru
        _
    $region6: #{tpu_custom_call.1} parent=1 // loop_footer
      %s20 = sadd.s32 1, %s16
    $region7: #{tpu_custom_call.1} parent=1 // loop_footer_branch
      %15 = sbr.rel target = $region3
    $region8: #{tpu_custom_call.1} parent=1 // loop_exit
      _
    %1350 = vsyncpa [#allocation3], 1
    %s1351 = scalar_lea.sflag [#allocation3], 1
    %1352 = vsyncpa %s1351, 1

</llo_original>
